<compile_context>
chip_gen: v6e
topology: v6e:2x2x1
jax: 0.10.0
libtpu: 0.0.40
codegen_flags: <defaults>
</compile_context>

<pallas_src>
import functools

import jax
import jax.numpy as jnp
from jax.experimental import pallas as pl
from jax.experimental.pallas import tpu as pltpu

_MIB = 1024 * 1024


def _const_weight_spec(block_shape, index_map):
    """BlockSpec for a constant-index weight block (DMA'd once per kernel).

    Requests single buffering so the weight does not occupy a second VMEM
    copy; silently falls back to the default spec on older jax versions.
    """
    try:
        return pl.BlockSpec(block_shape, index_map, pipeline_mode=pl.Buffered(1))
    except (TypeError, AttributeError):
        return pl.BlockSpec(block_shape, index_map)


# --------------------------------------------------------------------------- #
# Stage 1: fused QKV projection (scale folded into q, K emitted pre-transposed)
# --------------------------------------------------------------------------- #
def _qkv_proj_kernel(x_ref, w_qkv_ref, q_ref, kt_ref, v_ref, *, scale):
    x = x_ref[0]                                                     # (tn, C)
    C = x.shape[-1]
    # MXU matmul, f32 accumulation.
    qkv = jnp.dot(x, w_qkv_ref[...], preferred_element_type=jnp.float32)  # (tn, 3C)
    q_ref[0] = (qkv[:, :C] * scale).astype(q_ref.dtype)              # pre-scaled q
    # Transpose K once here (f32 XLU transpose) so attention does plain
    # (tq, D) @ (D, tk) matmuls with no per-step transposed-RHS handling.
    kt_ref[0] = qkv[:, C:2 * C].T.astype(kt_ref.dtype)               # (C, tn)
    v_ref[0] = qkv[:, 2 * C:].astype(v_ref.dtype)                    # (tn, C)


# --------------------------------------------------------------------------- #
# Stage 2a: full-KV attention + output projection (kv axis collapsed)
# --------------------------------------------------------------------------- #
def _attn_proj_full_kv_kernel(q_ref, kt_ref, v_ref, w_proj_ref, b_proj_ref,
                              o_ref, *, num_heads):
    H = num_heads
    C = q_ref.shape[-1]
    D = C // H

    q = q_ref[0]                       # (tq, C)   already scaled by 1/sqrt(D)
    kt = kt_ref[0]                     # (C, N)    K^T for the whole sequence
    v = v_ref[0]                       # (N, C)

    head_outs = []
    for h in range(H):
        q_h = q[:, h * D:(h + 1) * D]                     # (tq, D)
        kt_h = kt[h * D:(h + 1) * D, :]                   # (D, N)  sublane slice
        v_h = v[:, h * D:(h + 1) * D]                     # (N, D)

        s = jnp.dot(q_h, kt_h, preferred_element_type=jnp.float32)   # (tq, N) f32
        m = jnp.max(s, axis=-1, keepdims=True)
        p = jnp.exp(s - m)                                            # f32
        l = jnp.sum(p, axis=-1, keepdims=True)
        o_h = jnp.dot(p.astype(v_h.dtype), v_h,
                      preferred_element_type=jnp.float32)             # (tq, D) f32
        head_outs.append(o_h * pl.reciprocal(l, approx=True))

    attn = jnp.concatenate(head_outs, axis=-1).astype(w_proj_ref.dtype)  # (tq, C)
    out = jnp.dot(attn, w_proj_ref[...], preferred_element_type=jnp.float32)
    out = out + b_proj_ref[...].astype(jnp.float32)                   # (1, C) bcast
    o_ref[0] = out.astype(o_ref.dtype)                                # lane-dense


# --------------------------------------------------------------------------- #
# Stage 2b: flash attention (online softmax) + output projection per q tile
# --------------------------------------------------------------------------- #
def _flash_attn_proj_kernel(q_ref, kt_ref, v_ref, w_proj_ref, b_proj_ref, o_ref,
                            m_scr, l_scr, acc_scr, *, num_heads):
    # NOTE: the kv grid axis MUST be the innermost ("arbitrary") axis — the
    # scratch init/epilogue pattern below depends on it.
    ki = pl.program_id(2)
    n_k = pl.num_programs(2)
    H = num_heads
    C = q_ref.shape[-1]
    D = C // H

    @pl.when(ki == 0)
    def _():
        m_scr[...] = jnp.full(m_scr.shape, -jnp.inf, m_scr.dtype)
        l_scr[...] = jnp.zeros(l_scr.shape, l_scr.dtype)
        acc_scr[...] = jnp.zeros(acc_scr.shape, acc_scr.dtype)

    q = q_ref[0]                       # (tq, C)   already scaled by 1/sqrt(D)
    kt = kt_ref[0]                     # (C, tk)   K^T tile
    v = v_ref[0]                       # (tk, C)

    # Load m/l slabs once; per-head updates stay in registers and are stored
    # back as one (tq, H) slab per kv step (no 1-lane masked column stores).
    m_prev_all = m_scr[...]                                           # (tq, H) f32
    l_prev_all = l_scr[...]                                           # (tq, H) f32
    m_cols, l_cols = [], []

    for h in range(H):
        q_h = q[:, h * D:(h + 1) * D]                     # (tq, D)
        kt_h = kt[h * D:(h + 1) * D, :]                   # (D, tk) sublane slice
        v_h = v[:, h * D:(h + 1) * D]                     # (tk, D)

        s = jnp.dot(q_h, kt_h, preferred_element_type=jnp.float32)   # (tq, tk) f32

        m_prev = m_prev_all[:, h:h + 1]                               # (tq, 1)
        m_new = jnp.maximum(m_prev, jnp.max(s, axis=-1, keepdims=True))
        alpha = jnp.exp(m_prev - m_new)                               # (tq, 1) f32
        p = jnp.exp(s - m_new)                                        # (tq, tk) f32
        l_new = alpha * l_prev_all[:, h:h + 1] + jnp.sum(p, axis=-1, keepdims=True)

        pv = jnp.dot(p.astype(v_h.dtype), v_h,
                     preferred_element_type=jnp.float32)              # (tq, D) f32
        # Per-head accumulator lives at acc_scr[h] -> lane offset 0 store,
        # no offset-32/64/96 lane relayouts in the hot loop.
        acc_scr[h] = alpha * acc_scr[h] + pv

        m_cols.append(m_new)
        l_cols.append(l_new)

    m_scr[...] = jnp.concatenate(m_cols, axis=-1)                     # one slab store
    l_scr[...] = jnp.concatenate(l_cols, axis=-1)                     # one slab store

    @pl.when(ki == n_k - 1)
    def _():
        inv_l = pl.reciprocal(l_scr[...], approx=True)                # (tq, H) f32
        head_outs = [acc_scr[h] * inv_l[:, h:h + 1] for h in range(H)]
        attn = jnp.concatenate(head_outs, axis=-1).astype(w_proj_ref.dtype)
        out = jnp.dot(attn, w_proj_ref[...], preferred_element_type=jnp.float32)
        out = out + b_proj_ref[...].astype(jnp.float32)
        o_ref[0] = out.astype(o_ref.dtype)                            # lane-dense


# --------------------------------------------------------------------------- #
# Wrapper
# --------------------------------------------------------------------------- #
def seq_attention(x, w_qkv, w_proj, b_proj, *, num_heads,
                  seq_tile=256, q_tile=256, kv_tile=512,
                  force_flash=False):
    """SeqAttention forward.  Weights are pre-transposed: x @ W (+ b)."""
    B, N, C = x.shape
    assert C % num_heads == 0, "dim must be divisible by num_heads"
    head_dim = C // num_heads
    scale = head_dim ** -0.5
    itemsize = jnp.dtype(x.dtype).itemsize

    def _fit(t):
        return t if (t <= N and N % t == 0) else N

    tn, tq, tk = _fit(seq_tile), _fit(q_tile), _fit(kv_tile)

    def _vmem_limit(est_bytes):
        # Explicit budget (v7x: 64 MiB physical / 32 MiB default scoped).
        return int(min(max(2 * est_bytes, 32 * _MIB), 64 * _MIB))

    # ---- stage 1: fused QKV projection ------------------------------------ #
    # TODO(synk): for very large C, K-tile this contraction (extra grid axis +
    # f32 acc scratch) instead of holding the full (C, 3C) weight in VMEM.
    s1_cost = pl.CostEstimate(
        flops=2 * B * N * C * 3 * C,
        transcendentals=0,
        bytes_accessed=(4 * B * N * C + 3 * C * C) * itemsize)
    s1_vmem = (2 * tn * C + 3 * C * C + 2 * 3 * tn * C) * itemsize + tn * 3 * C * 4

    q, k_t, v = pl.pallas_call(
        functools.partial(_qkv_proj_kernel, scale=scale),
        out_shape=(jax.ShapeDtypeStruct((B, N, C), x.dtype),      # q (pre-scaled)
                   jax.ShapeDtypeStruct((B, C, N), x.dtype),      # K^T
                   jax.ShapeDtypeStruct((B, N, C), x.dtype)),     # V
        grid=(B, N // tn),
        in_specs=[
            pl.BlockSpec((1, tn, C), lambda b, i: (b, i, 0)),          # x tile
            _const_weight_spec((C, 3 * C), lambda b, i: (0, 0)),       # qkv weight
        ],
        out_specs=(pl.BlockSpec((1, tn, C), lambda b, i: (b, i, 0)),
                   pl.BlockSpec((1, C, tn), lambda b, i: (b, 0, i)),
                   pl.BlockSpec((1, tn, C), lambda b, i: (b, i, 0))),
        compiler_params=pltpu.CompilerParams(
            dimension_semantics=("parallel", "parallel"),
            vmem_limit_bytes=_vmem_limit(s1_vmem)),
        cost_estimate=s1_cost,
    )(x, w_qkv)

    # ---- stage 2: attention + output projection ---------------------------- #
    s2_cost = pl.CostEstimate(
        flops=4 * B * N * N * C + 2 * B * N * C * C,
        transcendentals=B * num_heads * N * N,
        bytes_accessed=(4 * B * N * C + C * C + C) * itemsize)

    kv_resident_bytes = 2 * N * C * itemsize          # full K^T + V, one batch elem
    score_tile_bytes = tq * N * 4                     # one head's f32 score tile
    use_full_kv = (not force_flash
                   and kv_resident_bytes <= 8 * _MIB
                   and score_tile_bytes <= 4 * _MIB)

    if use_full_kv:
        # kv axis collapsed: no online-softmax rescale, no scratch at all.
        s2_vmem = (2 * tq * C + 2 * 2 * N * C + C * C + C + 2 * tq * C) * itemsize \
                  + tq * N * 4 + tq * C * 4
        out = pl.pallas_call(
            functools.partial(_attn_proj_full_kv_kernel, num_heads=num_heads),
            out_shape=jax.ShapeDtypeStruct((B, N, C), x.dtype),
            grid=(B, N // tq),
            in_specs=[
                pl.BlockSpec((1, tq, C), lambda b, qi: (b, qi, 0)),    # q tile
                pl.BlockSpec((1, C, N), lambda b, qi: (b, 0, 0)),      # K^T (full)
                pl.BlockSpec((1, N, C), lambda b, qi: (b, 0, 0)),      # V (full)
                _const_weight_spec((C, C), lambda b, qi: (0, 0)),      # proj W
                _const_weight_spec((1, C), lambda b, qi: (0, 0)),      # proj b
            ],
            out_specs=pl.BlockSpec((1, tq, C), lambda b, qi: (b, qi, 0)),
            compiler_params=pltpu.CompilerParams(
                dimension_semantics=("parallel", "parallel"),
                vmem_limit_bytes=_vmem_limit(s2_vmem)),
            cost_estimate=s2_cost,
        )(q, k_t, v, w_proj, b_proj)
    else:
        # Flash path: kv axis innermost + "arbitrary" (scratch pattern relies
        # on it); (B, q_tiles) "parallel" feeds both v7x TensorCores.
        s2_vmem = (2 * tq * C + 2 * C * tk + 2 * tk * C + C * C + C
                   + 2 * tq * C) * itemsize \
                  + (num_heads * tq * head_dim + 2 * tq * num_heads) * 4 \
                  + tq * tk * 4
        out = pl.pallas_call(
            functools.partial(_flash_attn_proj_kernel, num_heads=num_heads),
            out_shape=jax.ShapeDtypeStruct((B, N, C), x.dtype),
            grid=(B, N // tq, N // tk),
            in_specs=[
                pl.BlockSpec((1, tq, C), lambda b, qi, ki: (b, qi, 0)),   # q tile
                pl.BlockSpec((1, C, tk), lambda b, qi, ki: (b, 0, ki)),   # K^T tile
                pl.BlockSpec((1, tk, C), lambda b, qi, ki: (b, ki, 0)),   # V tile
                _const_weight_spec((C, C), lambda b, qi, ki: (0, 0)),     # proj W
                _const_weight_spec((1, C), lambda b, qi, ki: (0, 0)),     # proj b
            ],
            out_specs=pl.BlockSpec((1, tq, C), lambda b, qi, ki: (b, qi, 0)),
            scratch_shapes=[
                pltpu.VMEM((tq, num_heads), jnp.float32),              # running max
                pltpu.VMEM((tq, num_heads), jnp.float32),              # running sum
                pltpu.VMEM((num_heads, tq, head_dim), jnp.float32),    # output acc
            ],
            compiler_params=pltpu.CompilerParams(
                dimension_semantics=("parallel", "parallel", "arbitrary"),
                vmem_limit_bytes=_vmem_limit(s2_vmem)),
            cost_estimate=s2_cost,
        )(q, k_t, v, w_proj, b_proj)
    return out


# --------------------------------------------------------------------------- #
# Pure-JAX reference (mirrors the PyTorch forward, eval mode, no mask)
# --------------------------------------------------------------------------- #
def seq_attention_ref(x, w_qkv, w_proj, b_proj, *, num_heads):
    B, N, C = x.shape
    H = num_heads
    D = C // H
    qkv = x @ w_qkv
    qkv = qkv.reshape(B, N, 3, H, D).transpose(2, 0, 3, 1, 4)
    q, k, v = qkv[0], qkv[1], qkv[2]                    # (B, H, N, D)
    s = (q @ jnp.swapaxes(k, -1, -2)) * (D ** -0.5)
    p = jax.nn.softmax(s, axis=-1)
    o = p @ v
    o = jnp.transpose(o, (0, 2, 1, 3)).reshape(B, N, C)
    return o @ w_proj + b_proj


if __name__ == "__main__":
    B, N, C = 2, 256, 128
    num_heads = 4                       # head_dim = 32

    key = jax.random.PRNGKey(0)
    k_x, k_wqkv, k_wproj, k_bproj = jax.random.split(key, 4)
    x = jax.random.normal(k_x, (B, N, C), dtype=jnp.float32)
    w_qkv = jax.random.normal(k_wqkv, (C, 3 * C), dtype=jnp.float32) * 0.02
    w_proj = jax.random.normal(k_wproj, (C, C), dtype=jnp.float32) * 0.02
    b_proj = jax.random.normal(k_bproj, (1, C), dtype=jnp.float32) * 0.02

    ref = seq_attention_ref(x, w_qkv, w_proj, b_proj, num_heads=num_heads)

    # f32, full-KV path (default for this size; kv grid axis collapsed).
    out = jax.block_until_ready(
        seq_attention(x, w_qkv, w_proj, b_proj, num_heads=num_heads))
    assert jnp.allclose(out, ref, atol=1e-3, rtol=1e-3), "f32 full-KV mismatch"

    # f32, flash (online-softmax) path, forced with smaller kv tiles.
    out_fl = jax.block_until_ready(
        seq_attention(x, w_qkv, w_proj, b_proj, num_heads=num_heads,
                      force_flash=True, kv_tile=128))
    assert jnp.allclose(out_fl, ref, atol=1e-3, rtol=1e-3), "f32 flash mismatch"

    # bf16 run: bf16 MXU operands, f32 softmax + accumulation inside kernels.
    xb, wqb, wpb, bpb = (a.astype(jnp.bfloat16) for a in (x, w_qkv, w_proj, b_proj))
    out_bf16 = jax.block_until_ready(
        seq_attention(xb, wqb, wpb, bpb, num_heads=num_heads))
    assert jnp.allclose(out_bf16.astype(jnp.float32), ref, atol=2e-2, rtol=2e-2), \
        "bf16 mismatch vs reference"

    print("KERNEL_OK")
</pallas_src>

<mosaic_0001>
module attributes {stable_mosaic.version = 11 : i64} {
  func.func @_qkv_proj_kernel(%arg0: i32, %arg1: i32, %arg2: memref<1x256x128xf32, #tpu.memory_space<vmem>>, %arg3: memref<128x384xf32, #tpu.memory_space<vmem>>, %arg4: memref<1x256x128xf32, #tpu.memory_space<vmem>>, %arg5: memref<1x128x256xf32, #tpu.memory_space<vmem>>, %arg6: memref<1x256x128xf32, #tpu.memory_space<vmem>>) attributes {dimension_semantics = [#tpu.dimension_semantics<parallel>, #tpu.dimension_semantics<parallel>], iteration_bounds = array<i64: 2, 1>, scalar_prefetch = 0 : i64, scratch_operands = 0 : i64, tpu.core_type = #tpu.core_type<tc>, window_params = [{transform_indices = @transform_0, window_bounds = array<i64: 1, 256, 128>}, {pipeline_mode = #tpu.pipeline_mode<synchronous>, transform_indices = @transform_1, window_bounds = array<i64: 128, 384>}, {transform_indices = @transform_2, window_bounds = array<i64: 1, 256, 128>}, {transform_indices = @transform_3, window_bounds = array<i64: 1, 128, 256>}, {transform_indices = @transform_4, window_bounds = array<i64: 1, 256, 128>}]} {
    %c0 = arith.constant 0 : index
    %c0_0 = arith.constant 0 : index
    %c0_1 = arith.constant 0 : index
    %0 = vector.load %arg2[%c0, %c0_0, %c0_1] : memref<1x256x128xf32, #tpu.memory_space<vmem>>, vector<1x256x128xf32>
    %1 = vector.shape_cast %0 : vector<1x256x128xf32> to vector<256x128xf32>
    %c0_2 = arith.constant 0 : index
    %c0_3 = arith.constant 0 : index
    %2 = vector.load %arg3[%c0_2, %c0_3] : memref<128x384xf32, #tpu.memory_space<vmem>>, vector<128x384xf32>
    %cst = arith.constant dense<0.000000e+00> : vector<256x384xf32>
    %3 = tpu.matmul %1, %2, %cst {dimension_numbers = #tpu.dot_dimension_numbers<[1], [0], [0], [1], [0, 0, 1, 1], [], []>} : vector<256x128xf32>, vector<128x384xf32>, vector<256x384xf32> -> vector<256x384xf32>
    %4 = vector.extract_strided_slice %3 {offsets = [0, 0], sizes = [256, 128], strides = [1, 1]} : vector<256x384xf32> to vector<256x128xf32>
    %cst_4 = arith.constant 0.176776692 : f32
    %5 = vector.broadcast %cst_4 : f32 to vector<256x128xf32>
    %6 = arith.mulf %4, %5 : vector<256x128xf32>
    %c0_5 = arith.constant 0 : index
    %c0_6 = arith.constant 0 : index
    %c0_7 = arith.constant 0 : index
    %7 = vector.load %arg4[%c0_5, %c0_6, %c0_7] : memref<1x256x128xf32, #tpu.memory_space<vmem>>, vector<1x256x128xf32>
    %8 = vector.shape_cast %7 : vector<1x256x128xf32> to vector<256x128xf32>
    %9 = vector.shape_cast %6 : vector<256x128xf32> to vector<1x256x128xf32>
    tpu.vector_store %arg4[%c0_5, %c0_6, %c0_7], %9 {strides = array<i32>} : memref<1x256x128xf32, #tpu.memory_space<vmem>>, vector<1x256x128xf32>,
    %10 = vector.extract_strided_slice %3 {offsets = [0, 128], sizes = [256, 128], strides = [1, 1]} : vector<256x384xf32> to vector<256x128xf32>
    %11 = tpu.transpose %10, [1, 0] : vector<256x128xf32> -> vector<128x256xf32>
    %c0_8 = arith.constant 0 : index
    %c0_9 = arith.constant 0 : index
    %c0_10 = arith.constant 0 : index
    %12 = vector.load %arg5[%c0_8, %c0_9, %c0_10] : memref<1x128x256xf32, #tpu.memory_space<vmem>>, vector<1x128x256xf32>
    %13 = vector.shape_cast %12 : vector<1x128x256xf32> to vector<128x256xf32>
    %14 = vector.shape_cast %11 : vector<128x256xf32> to vector<1x128x256xf32>
    tpu.vector_store %arg5[%c0_8, %c0_9, %c0_10], %14 {strides = array<i32>} : memref<1x128x256xf32, #tpu.memory_space<vmem>>, vector<1x128x256xf32>,
    %15 = vector.extract_strided_slice %3 {offsets = [0, 256], sizes = [256, 128], strides = [1, 1]} : vector<256x384xf32> to vector<256x128xf32>
    %c0_11 = arith.constant 0 : index
    %c0_12 = arith.constant 0 : index
    %c0_13 = arith.constant 0 : index
    %16 = vector.load %arg6[%c0_11, %c0_12, %c0_13] : memref<1x256x128xf32, #tpu.memory_space<vmem>>, vector<1x256x128xf32>
    %17 = vector.shape_cast %16 : vector<1x256x128xf32> to vector<256x128xf32>
    %18 = vector.shape_cast %15 : vector<256x128xf32> to vector<1x256x128xf32>
    tpu.vector_store %arg6[%c0_11, %c0_12, %c0_13], %18 {strides = array<i32>} : memref<1x256x128xf32, #tpu.memory_space<vmem>>, vector<1x256x128xf32>,
    return
  }
  func.func @transform_0(%arg0: i32, %arg1: i32) -> (i32, i32, i32) {
    %c0_i32 = arith.constant 0 : i32
    %c0_i32_0 = arith.constant 0 : i32
    return %arg0, %arg1, %c0_i32 : i32, i32, i32
  }
  func.func @transform_1(%arg0: i32, %arg1: i32) -> (i32, i32) {
    %c0_i32 = arith.constant 0 : i32
    %c0_i32_0 = arith.constant 0 : i32
    %c0_i32_1 = arith.constant 0 : i32
    return %c0_i32, %c0_i32_0 : i32, i32
  }
  func.func @transform_2(%arg0: i32, %arg1: i32) -> (i32, i32, i32) {
    %c0_i32 = arith.constant 0 : i32
    %c0_i32_0 = arith.constant 0 : i32
    return %arg0, %arg1, %c0_i32 : i32, i32, i32
  }
  func.func @transform_3(%arg0: i32, %arg1: i32) -> (i32, i32, i32) {
    %c0_i32 = arith.constant 0 : i32
    %c0_i32_0 = arith.constant 0 : i32
    return %arg0, %c0_i32, %arg1 : i32, i32, i32
  }
  func.func @transform_4(%arg0: i32, %arg1: i32) -> (i32, i32, i32) {
    %c0_i32 = arith.constant 0 : i32
    %c0_i32_0 = arith.constant 0 : i32
    return %arg0, %arg1, %c0_i32 : i32, i32, i32
  }
}

</mosaic_0001>

<llo_original>
// kernel: tpu_custom_call.1
$region0: #{tpu_custom_call.1}
  #allocation0 [shape = 'u32[]', space=smem, size = 0x4, offset = 0x4, fixed_abs, tag = 'smem constant byte address 0x4 - core index']
  #allocation1 [shape = 'u32[144,128]{1,0:T(1,128)}', space=vmem, size = 0x12000, scoped, tag = 'internal scratch']
  %s0 = inlined_call_operand.hbm [shape: f32[2,256,128], index: 0, kind: input, shape index: {}]
  %s1 = inlined_call_operand.hbm [shape: f32[128,384], index: 1, kind: input, shape index: {}]
  %s2 = inlined_call_operand.hbm [shape: f32[2,256,128], index: 2, kind: output, shape index: {0}]
  %s3 = inlined_call_operand.hbm [shape: f32[2,128,256], index: 3, kind: output, shape index: {1}]
  %s4 = inlined_call_operand.hbm [shape: f32[2,256,128], index: 4, kind: output, shape index: {2}]
  %5 = xla_tuple %s2, %s3, %s4
  %s6 = sld [smem:[#allocation0]]
  $region65: #{tpu_custom_call.1} parent=0
    _
  %s8 = ssub.s32 1, %s6
  %s9 = scalar_select 0, %s8, %s6
  $region1: #{tpu_custom_call.1} parent=0
    #allocation2 [shape = 'u8[262144]{0}', space=vmem, size = 0x40000, scoped, tag = 'input window, operand 0']
    #allocation3 [shape = 's32[2]{0}', space=sflag, size = 0x8, scoped, tag = 'scoped memory for tpu_custom_call.1']
    #allocation4 [shape = 's32[2]{0}', space=sflag, size = 0x8, scoped, tag = 'scoped memory for tpu_custom_call.1']
    #allocation5 [shape = 'u8[196608]{0}', space=vmem, size = 0x30000, scoped, tag = 'input window, operand 1, single buffered']
    #allocation6 [shape = 's32[1]{0}', space=sflag, size = 0x4, scoped, tag = 'scoped memory for tpu_custom_call.1']
    #allocation7 [shape = 'u8[262144]{0}', space=vmem, size = 0x40000, scoped, tag = 'output window, operand 0']
    #allocation8 [shape = 'u8[262144]{0}', space=vmem, size = 0x40000, scoped, tag = 'output window, operand 1']
    #allocation9 [shape = 's32[2]{0}', space=sflag, size = 0x8, scoped, tag = 'scoped memory for tpu_custom_call.1']
    #allocation10 [shape = 'u8[262144]{0}', space=vmem, size = 0x40000, scoped, tag = 'output window, operand 2']
    %10 = vsyncpa [#allocation3], 0
    %s11 = scalar_lea.sflag [#allocation3], 1
    %12 = vsyncpa %s11, 0
    %13 = vsyncpa [#allocation6], 0
    %14 = vsyncpa [#allocation4], 0
    %s15 = scalar_lea.sflag [#allocation4], 1
    %16 = vsyncpa %s15, 0
    %17 = vsyncpa [#allocation9], 0
    %s18 = scalar_lea.sflag [#allocation9], 1
    %19 = vsyncpa %s18, 0
    loop: start=0, step=1, limit=4
    $region2: #{tpu_custom_call.1} parent=1 // loop_pre_header
      _
    $region3: #{tpu_custom_call.1} parent=1 // loop_header
      %s21 = sphi 0, %s25
      %p22 = scmp.ge.s32.totalorder %s21, 4
      %s28 = sphi 0, %s40
      %s29 = sphi 0, %s36
      %s30 = sphi 0, %s28
      %s31 = sphi 0, %s29
      %s32 = sphi 0, %s30
      %s33 = sphi 0, %s31
      %s45 = sphi 0, %s47
      %s48 = sphi 0, %s45
      %s49 = sphi 0, %s48
      %s65 = sphi 0, %s49
      %s69 = sphi 0, %s69
      %s71 = sphi 0, %s69
      %s72 = sphi 0, %s71
      %s86 = sphi 0, %s72
      %s94 = sphi 0, %s96
      %s97 = sphi 0, %s94
      %s98 = sphi 0, %s97
      %s114 = sphi 0, %s98
      %s122 = sphi 0, %s124
      %s125 = sphi 0, %s122
      %s126 = sphi 0, %s125
      %s142 = sphi 0, %s126
      %s150 = sphi 0, %s152
      %s153 = sphi 0, %s150
      %s154 = sphi 0, %s153
      %s170 = sphi 0, %s154
    $region4: #{tpu_custom_call.1} parent=1 // loop_header_branch
      %24 = sbr.rel (%p22) target = $region8
    $region5: #{tpu_custom_call.1} parent=1 // loop_body
      %s26 = ssub.s32 %s21, 1
      %s27 = ssub.s32 %s21, 2
      %s34 = sadd.s32 1, %s29
      %p35 = scmp.ge.s32.totalorder %s34, 1
      %s36 = scalar_select %p35, 0, %s34
      %s37 = sadd.s32 1, %s28
      %s38 = scalar_select %p35, %s37, %s28
      %p39 = scmp.ge.s32.totalorder %s38, 2
      %s40 = scalar_select %p39, 0, %s38
      %s41 = ssub.s32 %s28, %s40
      %s42 = ssub.s32 %s29, %s36
      %s43 = sor.u32 %s41, %s42
      %p44 = scmp.eq.s32.totalorder %s43, 0
      %s46 = sadd.s32 %s45, 1
      %s47 = scalar_select %p44, %s45, %s46
      %p50 = pneg %p44
      %p51 = scmp.eq.s32.totalorder %s21, 1
      %p52 = por %p50, %p51
      %p53 = scmp.ne.s32.totalorder %s45, %s48
      %p54 = scmp.eq.s32.totalorder %s21, 0
      %p55 = por %p53, %p54
      %p56 = scmp.ne.s32.totalorder %s45, %s48
      %p57 = scmp.eq.s32.totalorder %s26, 1
      %p58 = por %p56, %p57
      %p59 = scmp.ne.s32.totalorder %s48, %s49
      %p60 = scmp.eq.s32.totalorder %s26, 0
      %p61 = por %p59, %p60
      %p62 = scmp.ne.s32.totalorder %s48, %s49
      %p63 = scmp.eq.s32.totalorder %s27, 1
      %p64 = por %p62, %p63
      %p66 = scmp.ne.s32.totalorder %s49, %s65
      %p67 = scmp.eq.s32.totalorder %s27, 0
      %p68 = por %p66, %p67
      %s70 = sadd.s32 %s69, 1
      %p73 = scmp.eq.s32.totalorder %s21, 1
      %p74 = scmp.ne.s32.totalorder %s69, %s71
      %p75 = scmp.eq.s32.totalorder %s21, 0
      %p76 = por %p74, %p75
      %p77 = scmp.ne.s32.totalorder %s69, %s71
      %p78 = scmp.eq.s32.totalorder %s26, 1
      %p79 = por %p77, %p78
      %p80 = scmp.ne.s32.totalorder %s71, %s72
      %p81 = scmp.eq.s32.totalorder %s26, 0
      %p82 = por %p80, %p81
      %p83 = scmp.ne.s32.totalorder %s71, %s72
      %p84 = scmp.eq.s32.totalorder %s27, 1
      %p85 = por %p83, %p84
      %p87 = scmp.ne.s32.totalorder %s72, %s86
      %p88 = scmp.eq.s32.totalorder %s27, 0
      %p89 = por %p87, %p88
      %s90 = ssub.s32 %s28, %s40
      %s91 = ssub.s32 %s29, %s36
      %s92 = sor.u32 %s90, %s91
      %p93 = scmp.eq.s32.totalorder %s92, 0
      %s95 = sadd.s32 %s94, 1
      %s96 = scalar_select %p93, %s94, %s95
      %p99 = pneg %p93
      %p100 = scmp.eq.s32.totalorder %s21, 1
      %p101 = por %p99, %p100
      %p102 = scmp.ne.s32.totalorder %s94, %s97
      %p103 = scmp.eq.s32.totalorder %s21, 0
      %p104 = por %p102, %p103
      %p105 = scmp.ne.s32.totalorder %s94, %s97
      %p106 = scmp.eq.s32.totalorder %s26, 1
      %p107 = por %p105, %p106
      %p108 = scmp.ne.s32.totalorder %s97, %s98
      %p109 = scmp.eq.s32.totalorder %s26, 0
      %p110 = por %p108, %p109
      %p111 = scmp.ne.s32.totalorder %s97, %s98
      %p112 = scmp.eq.s32.totalorder %s27, 1
      %p113 = por %p111, %p112
      %p115 = scmp.ne.s32.totalorder %s98, %s114
      %p116 = scmp.eq.s32.totalorder %s27, 0
      %p117 = por %p115, %p116
      %s118 = ssub.s32 %s28, %s40
      %s119 = ssub.s32 %s29, %s36
      %s120 = sor.u32 %s118, %s119
      %p121 = scmp.eq.s32.totalorder %s120, 0
      %s123 = sadd.s32 %s122, 1
      %s124 = scalar_select %p121, %s122, %s123
      %p127 = pneg %p121
      %p128 = scmp.eq.s32.totalorder %s21, 1
      %p129 = por %p127, %p128
      %p130 = scmp.ne.s32.totalorder %s122, %s125
      %p131 = scmp.eq.s32.totalorder %s21, 0
      %p132 = por %p130, %p131
      %p133 = scmp.ne.s32.totalorder %s122, %s125
      %p134 = scmp.eq.s32.totalorder %s26, 1
      %p135 = por %p133, %p134
      %p136 = scmp.ne.s32.totalorder %s125, %s126
      %p137 = scmp.eq.s32.totalorder %s26, 0
      %p138 = por %p136, %p137
      %p139 = scmp.ne.s32.totalorder %s125, %s126
      %p140 = scmp.eq.s32.totalorder %s27, 1
      %p141 = por %p139, %p140
      %p143 = scmp.ne.s32.totalorder %s126, %s142
      %p144 = scmp.eq.s32.totalorder %s27, 0
      %p145 = por %p143, %p144
      %s146 = ssub.s32 %s28, %s40
      %s147 = ssub.s32 %s29, %s36
      %s148 = sor.u32 %s146, %s147
      %p149 = scmp.eq.s32.totalorder %s148, 0
      %s151 = sadd.s32 %s150, 1
      %s152 = scalar_select %p149, %s150, %s151
      %p155 = pneg %p149
      %p156 = scmp.eq.s32.totalorder %s21, 1
      %p157 = por %p155, %p156
      %p158 = scmp.ne.s32.totalorder %s150, %s153
      %p159 = scmp.eq.s32.totalorder %s21, 0
      %p160 = por %p158, %p159
      %p161 = scmp.ne.s32.totalorder %s150, %s153
      %p162 = scmp.eq.s32.totalorder %s26, 1
      %p163 = por %p161, %p162
      %p164 = scmp.ne.s32.totalorder %s153, %s154
      %p165 = scmp.eq.s32.totalorder %s26, 0
      %p166 = por %p164, %p165
      %p167 = scmp.ne.s32.totalorder %s153, %s154
      %p168 = scmp.eq.s32.totalorder %s27, 1
      %p169 = por %p167, %p168
      %p171 = scmp.ne.s32.totalorder %s154, %s170
      %p172 = scmp.eq.s32.totalorder %s27, 0
      %p173 = por %p171, %p172
      %p174 = scmp.le.s32.totalorder 1, %s21
      %p175 = scmp.lt.s32.totalorder %s21, 3
      %p176 = pnand %p174, %p175
      %p177 = pneg %p176
      // Predicated region
      $region9: #{tpu_custom_call.1} parent=5 // pred_check
        _
      $region10: #{tpu_custom_call.1} parent=5 // pred_check_branch
        %179 = sbr.rel (%p176) target = $region12
      $region11: #{tpu_custom_call.1} parent=5 // pred_region
        %s180 = ssub.s32 %s21, 1
        // Predicated region
        $region13: #{tpu_custom_call.1} parent=11 // pred_check
          %p181 = pneg %p82
        $region14: #{tpu_custom_call.1} parent=11 // pred_check_branch
          %183 = sbr.rel (%p181) target = $region16
        $region15: #{tpu_custom_call.1} parent=11 // pred_region
          %s185 = ssub.s32 6144, 6144
          %186 = vsyncadd [#allocation6], %s185
          %s187 = sshll.u32 [#allocation5], 4
          %s188 = int_to_ptr.vmem [resolvable:$true] %s187
          %193 = dma.hbm_to_vmem [thread:$0]  %s1, 6144, %s188, [#allocation6], 384, 384, 24
        $region16: #{tpu_custom_call.1} parent=11 // pred_fallthru
          _
      $region12: #{tpu_custom_call.1} parent=5 // pred_fallthru
        _
      %p194 = scmp.lt.s32.totalorder %s21, 2
      // Predicated region
      $region17: #{tpu_custom_call.1} parent=5 // pred_check
        %p195 = pneg %p194
      $region18: #{tpu_custom_call.1} parent=5 // pred_check_branch
        %197 = sbr.rel (%p195) target = $region20
      $region19: #{tpu_custom_call.1} parent=5 // pred_region
        // Predicated region
        $region21: #{tpu_custom_call.1} parent=19 // pred_check
          %p198 = pneg %p55
        $region22: #{tpu_custom_call.1} parent=19 // pred_check_branch
          %200 = sbr.rel (%p198) target = $region24
        $region23: #{tpu_custom_call.1} parent=19 // pred_region
          %s201 = sand.u32 %s45, 1
          %s202 = scalar_lea.sflag [#allocation3], %s201
          %s203 = sand.u32 %s45, 1
          %s204 = smul.addr %s203, 256
          %s205 = scalar_lea.vmem [#allocation2], %s204
          %s206 = smul.u32 32, %s29
          %s208 = ssub.s32 4096, 4096
          %209 = vsyncadd %s202, %s208
          %s210 = smul.addr %s28, 32
          %s211 = sadd.s32 %s206, %s210
          %s212 = smul.addr %s211, 128
          %s213 = scalar_lea.hbm %s0, %s212
          %s214 = sshll.u32 %s205, 4
          %s215 = int_to_ptr.vmem [resolvable:$true] %s214
          %220 = dma.hbm_to_vmem [thread:$0]  %s213, 4096, %s215, %s202, 128, 128, 8
        $region24: #{tpu_custom_call.1} parent=19 // pred_fallthru
          _
      $region20: #{tpu_custom_call.1} parent=5 // pred_fallthru
        _
      %p221 = scmp.le.s32.totalorder 1, %s21
      %p222 = scmp.lt.s32.totalorder %s21, 3
      %p223 = pnand %p221, %p222
      %p224 = pneg %p223
      // Predicated region
      $region25: #{tpu_custom_call.1} parent=5 // pred_check
        _
      $region26: #{tpu_custom_call.1} parent=5 // pred_check_branch
        %226 = sbr.rel (%p223) target = $region28
      $region27: #{tpu_custom_call.1} parent=5 // pred_region
        %s227 = ssub.s32 %s21, 1
        %s228 = sand.u32 %s48, 1
        %s229 = scalar_lea.sflag [#allocation3], %s228
        %s230 = sand.u32 %s48, 1
        %s231 = smul.addr %s230, 256
        %s232 = scalar_lea.vmem [#allocation2], %s231
        // Predicated region
        $region29: #{tpu_custom_call.1} parent=27 // pred_check
          %p233 = pneg %p61
        $region30: #{tpu_custom_call.1} parent=27 // pred_check_branch
          %235 = sbr.rel (%p233) target = $region32
        $region31: #{tpu_custom_call.1} parent=27 // pred_region
          %236 = dma.done %s229, 4096
        $region32: #{tpu_custom_call.1} parent=27 // pred_fallthru
          _
        // Predicated region
        $region33: #{tpu_custom_call.1} parent=27 // pred_check
          %p237 = pneg %p82
        $region34: #{tpu_custom_call.1} parent=27 // pred_check_branch
          %239 = sbr.rel (%p237) target = $region36
        $region35: #{tpu_custom_call.1} parent=27 // pred_region
          %240 = dma.done [#allocation6], 6144
        $region36: #{tpu_custom_call.1} parent=27 // pred_fallthru
          _
        %s241 = sand.u32 %s48, 1
        %s242 = scalar_lea.sflag [#allocation3], %s241
        %s243 = sand.u32 %s48, 1
        %s244 = smul.addr %s243, 256
        %s245 = scalar_lea.vmem [#allocation2], %s244
        %p246 = pneg %p61
        %p247 = pneg %p58
        %p248 = pneg %p82
        %p249 = pneg %p79
        %p250 = pneg %p110
        %p251 = pneg %p107
        %s252 = sand.u32 %s97, 1
        %s253 = scalar_lea.sflag [#allocation4], %s252
        %s254 = sand.u32 %s97, 1
        %s255 = smul.addr %s254, 256
        %s256 = scalar_lea.vmem [#allocation7], %s255
        %p257 = pneg %p138
        %p258 = pneg %p135
        %s259 = sand.u32 %s26, 1
        %s260 = scalar_lea.sflag [#allocation9], %s259
        %s261 = sand.u32 %s125, 1
        %s262 = smul.addr %s261, 256
        %s263 = scalar_lea.vmem [#allocation8], %s262
        %p264 = pneg %p166
        %p265 = pneg %p163
        %s266 = sand.u32 %s26, 1
        %s267 = scalar_lea.sflag [#allocation9], %s266
        %s268 = sand.u32 %s153, 1
        %s269 = smul.addr %s268, 256
        %s270 = scalar_lea.vmem [#allocation10], %s269
        %s271 = smul.u32 32, %s31
        %s272 = smul.u32 32, %s31
        %s273 = smul.u32 2, %s31
        %s274 = smul.u32 32, %s31
        %v275 = vld [vmem:[%s232] sm:$0xff]
        %v276 = vld [vmem:[%s232 + $0x8] sm:$0xff]
        %v277 = vld [vmem:[%s232 + $0x10] sm:$0xff]
        %v278 = vld [vmem:[%s232 + $0x18] sm:$0xff]
        %v279 = vld [vmem:[%s232 + $0x20] sm:$0xff]
        %v280 = vld [vmem:[%s232 + $0x28] sm:$0xff]
        %v281 = vld [vmem:[%s232 + $0x30] sm:$0xff]
        %v282 = vld [vmem:[%s232 + $0x38] sm:$0xff]
        %v283 = vld [vmem:[%s232 + $0x40] sm:$0xff]
        %v284 = vld [vmem:[%s232 + $0x48] sm:$0xff]
        %v285 = vld [vmem:[%s232 + $0x50] sm:$0xff]
        %v286 = vld [vmem:[%s232 + $0x58] sm:$0xff]
        %v287 = vld [vmem:[%s232 + $0x60] sm:$0xff]
        %v288 = vld [vmem:[%s232 + $0x68] sm:$0xff]
        %v289 = vld [vmem:[%s232 + $0x70] sm:$0xff]
        %v290 = vld [vmem:[%s232 + $0x78] sm:$0xff]
        %v291 = vld [vmem:[%s232 + $0x80] sm:$0xff]
        %v292 = vld [vmem:[%s232 + $0x88] sm:$0xff]
        %v293 = vld [vmem:[%s232 + $0x90] sm:$0xff]
        %v294 = vld [vmem:[%s232 + $0x98] sm:$0xff]
        %v295 = vld [vmem:[%s232 + $0xa0] sm:$0xff]
        %v296 = vld [vmem:[%s232 + $0xa8] sm:$0xff]
        %v297 = vld [vmem:[%s232 + $0xb0] sm:$0xff]
        %v298 = vld [vmem:[%s232 + $0xb8] sm:$0xff]
        %v299 = vld [vmem:[%s232 + $0xc0] sm:$0xff]
        %v300 = vld [vmem:[%s232 + $0xc8] sm:$0xff]
        %v301 = vld [vmem:[%s232 + $0xd0] sm:$0xff]
        %v302 = vld [vmem:[%s232 + $0xd8] sm:$0xff]
        %v303 = vld [vmem:[%s232 + $0xe0] sm:$0xff]
        %v304 = vld [vmem:[%s232 + $0xe8] sm:$0xff]
        %v305 = vld [vmem:[%s232 + $0xf0] sm:$0xff]
        %v306 = vld [vmem:[%s232 + $0xf8] sm:$0xff]
        %v307 = vld [vmem:[#allocation5] sm:$0xff]
        %v308 = vld [vmem:[#allocation5 + $0x8] sm:$0xff]
        %v309 = vld [vmem:[#allocation5 + $0x10] sm:$0xff]
        %v310 = vld [vmem:[#allocation5 + $0x18] sm:$0xff]
        %v311 = vld [vmem:[#allocation5 + $0x20] sm:$0xff]
        %v312 = vld [vmem:[#allocation5 + $0x28] sm:$0xff]
        %v313 = vld [vmem:[#allocation5 + $0x30] sm:$0xff]
        %v314 = vld [vmem:[#allocation5 + $0x38] sm:$0xff]
        %v315 = vld [vmem:[#allocation5 + $0x40] sm:$0xff]
        %v316 = vld [vmem:[#allocation5 + $0x48] sm:$0xff]
        %v317 = vld [vmem:[#allocation5 + $0x50] sm:$0xff]
        %v318 = vld [vmem:[#allocation5 + $0x58] sm:$0xff]
        %v319 = vld [vmem:[#allocation5 + $0x60] sm:$0xff]
        %v320 = vld [vmem:[#allocation5 + $0x68] sm:$0xff]
        %v321 = vld [vmem:[#allocation5 + $0x70] sm:$0xff]
        %v322 = vld [vmem:[#allocation5 + $0x78] sm:$0xff]
        %v323 = vld [vmem:[#allocation5 + $0x80] sm:$0xff]
        %v324 = vld [vmem:[#allocation5 + $0x88] sm:$0xff]
        %v325 = vld [vmem:[#allocation5 + $0x90] sm:$0xff]
        %v326 = vld [vmem:[#allocation5 + $0x98] sm:$0xff]
        %v327 = vld [vmem:[#allocation5 + $0xa0] sm:$0xff]
        %v328 = vld [vmem:[#allocation5 + $0xa8] sm:$0xff]
        %v329 = vld [vmem:[#allocation5 + $0xb0] sm:$0xff]
        %v330 = vld [vmem:[#allocation5 + $0xb8] sm:$0xff]
        %v331 = vld [vmem:[#allocation5 + $0xc0] sm:$0xff]
        %v332 = vld [vmem:[#allocation5 + $0xc8] sm:$0xff]
        %v333 = vld [vmem:[#allocation5 + $0xd0] sm:$0xff]
        %v334 = vld [vmem:[#allocation5 + $0xd8] sm:$0xff]
        %v335 = vld [vmem:[#allocation5 + $0xe0] sm:$0xff]
        %v336 = vld [vmem:[#allocation5 + $0xe8] sm:$0xff]
        %v337 = vld [vmem:[#allocation5 + $0xf0] sm:$0xff]
        %v338 = vld [vmem:[#allocation5 + $0xf8] sm:$0xff]
        %v339 = vld [vmem:[#allocation5 + $0x100] sm:$0xff]
        %v340 = vld [vmem:[#allocation5 + $0x108] sm:$0xff]
        %v341 = vld [vmem:[#allocation5 + $0x110] sm:$0xff]
        %v342 = vld [vmem:[#allocation5 + $0x118] sm:$0xff]
        %v343 = vld [vmem:[#allocation5 + $0x120] sm:$0xff]
        %v344 = vld [vmem:[#allocation5 + $0x128] sm:$0xff]
        %v345 = vld [vmem:[#allocation5 + $0x130] sm:$0xff]
        %v346 = vld [vmem:[#allocation5 + $0x138] sm:$0xff]
        %v347 = vld [vmem:[#allocation5 + $0x140] sm:$0xff]
        %v348 = vld [vmem:[#allocation5 + $0x148] sm:$0xff]
        %v349 = vld [vmem:[#allocation5 + $0x150] sm:$0xff]
        %v350 = vld [vmem:[#allocation5 + $0x158] sm:$0xff]
        %v351 = vld [vmem:[#allocation5 + $0x160] sm:$0xff]
        %v352 = vld [vmem:[#allocation5 + $0x168] sm:$0xff]
        %v353 = vld [vmem:[#allocation5 + $0x170] sm:$0xff]
        %v354 = vld [vmem:[#allocation5 + $0x178] sm:$0xff]
        %355 = vmatprep.subr.mxu0 %v353
        %356 = vmatpush1.msra.mxu0 %v352
        %357 = vmatprep.subr.mxu0 %v350
        %358 = vmatpush1.msra.mxu0 %v349
        %359 = vmatprep.subr.mxu0 %v347
        %360 = vmatpush1.msra.mxu0 %v346
        %361 = vmatprep.subr.mxu0 %v344
        %362 = vmatpush1.msra.mxu0 %v343
        %363 = vmatprep.subr.mxu0 %v341
        %364 = vmatpush1.msra.mxu0 %v340
        %365 = vmatprep.subr.mxu0 %v338
        %366 = vmatpush1.msra.mxu0 %v337
        %367 = vmatprep.subr.mxu0 %v335
        %368 = vmatpush1.msra.mxu0 %v334
        %369 = vmatprep.subr.mxu0 %v332
        %370 = vmatpush1.msra.mxu0 %v331
        %371 = vmatprep.subr.mxu0 %v329
        %372 = vmatpush1.msra.mxu0 %v328
        %373 = vmatprep.subr.mxu0 %v326
        %374 = vmatpush1.msra.mxu0 %v325
        %375 = vmatprep.subr.mxu0 %v323
        %376 = vmatpush1.msra.mxu0 %v322
        %377 = vmatprep.subr.mxu0 %v320
        %378 = vmatpush1.msra.mxu0 %v319
        %379 = vmatprep.subr.mxu0 %v317
        %380 = vmatpush1.msra.mxu0 %v316
        %381 = vmatprep.subr.mxu0 %v314
        %382 = vmatpush1.msra.mxu0 %v313
        %383 = vmatprep.subr.mxu0 %v311
        %384 = vmatpush1.msra.mxu0 %v310
        %385 = vmatprep.subr.mxu0 %v308
        %386 = vmatpush1.msra.mxu0 %v307
        %387 = vmatprep.subr.mxu0 0.0
        %388 = vmatpush2.msra.mxu0 0.0
        %389 = vmatprep.subr.mxu0 0.0
        %390 = vmatpush2.msra.mxu0 0.0
        %391 = vmatprep.subr.mxu0 0.0
        %392 = vmatpush2.msra.mxu0 0.0
        %393 = vmatprep.subr.mxu0 0.0
        %394 = vmatpush2.msra.mxu0 0.0
        %395 = vmatprep.subr.mxu0 0.0
        %396 = vmatpush2.msra.mxu0 0.0
        %397 = vmatprep.subr.mxu0 0.0
        %398 = vmatpush2.msra.mxu0 0.0
        %399 = vmatprep.subr.mxu0 0.0
        %400 = vmatpush2.msra.mxu0 0.0
        %401 = vmatprep.subr.mxu0 0.0
        %402 = vmatpush2.msra.mxu0 0.0
        %403 = vmatprep.subr.mxu0 0.0
        %404 = vmatpush2.msra.mxu0 0.0
        %405 = vmatprep.subr.mxu0 0.0
        %406 = vmatpush2.msra.mxu0 0.0
        %407 = vmatprep.subr.mxu0 0.0
        %408 = vmatpush2.msra.mxu0 0.0
        %409 = vmatprep.subr.mxu0 0.0
        %410 = vmatpush2.msra.mxu0 0.0
        %411 = vmatprep.subr.mxu0 0.0
        %412 = vmatpush2.msra.mxu0 0.0
        %413 = vmatprep.subr.mxu0 0.0
        %414 = vmatpush2.msra.mxu0 0.0
        %415 = vmatprep.subr.mxu0 0.0
        %416 = vmatpush2.msra.mxu0 0.0
        %417 = vmatprep.subr.mxu0 0.0
        %418 = vmatpush2.msra.mxu0 0.0
        %419 = vmatprep.mubr.f32.mxu0 0.0
        %420 = vmatmul.mubr.f32.gmra.mxu0 %v275
        %v421 = vpop.f32.mrf.mxu0
        %v422 = vadd.f32 0.0, %v421
        %v423 = vpop.f32.mrf.mxu0
        %v424 = vadd.f32 0.0, %v423
        %425 = vmatprep.mubr.f32.mxu0 0.0
        %426 = vmatmul.mubr.f32.gmra.mxu0 %v276
        %v427 = vpop.f32.mrf.mxu0
        %v428 = vadd.f32 0.0, %v427
        %v429 = vpop.f32.mrf.mxu0
        %v430 = vadd.f32 0.0, %v429
        %431 = vmatprep.mubr.f32.mxu0 0.0
        %432 = vmatmul.mubr.f32.gmra.mxu0 %v277
        %v433 = vpop.f32.mrf.mxu0
        %v434 = vadd.f32 0.0, %v433
        %v435 = vpop.f32.mrf.mxu0
        %v436 = vadd.f32 0.0, %v435
        %437 = vmatprep.mubr.f32.mxu0 0.0
        %438 = vmatmul.mubr.f32.gmra.mxu0 %v278
        %v439 = vpop.f32.mrf.mxu0
        %v440 = vadd.f32 0.0, %v439
        %v441 = vpop.f32.mrf.mxu0
        %v442 = vadd.f32 0.0, %v441
        %443 = vmatprep.mubr.f32.mxu0 0.0
        %444 = vmatmul.mubr.f32.gmra.mxu0 %v279
        %v445 = vpop.f32.mrf.mxu0
        %v446 = vadd.f32 0.0, %v445
        %v447 = vpop.f32.mrf.mxu0
        %v448 = vadd.f32 0.0, %v447
        %449 = vmatprep.mubr.f32.mxu0 0.0
        %450 = vmatmul.mubr.f32.gmra.mxu0 %v280
        %v451 = vpop.f32.mrf.mxu0
        %v452 = vadd.f32 0.0, %v451
        %v453 = vpop.f32.mrf.mxu0
        %v454 = vadd.f32 0.0, %v453
        %455 = vmatprep.mubr.f32.mxu0 0.0
        %456 = vmatmul.mubr.f32.gmra.mxu0 %v281
        %v457 = vpop.f32.mrf.mxu0
        %v458 = vadd.f32 0.0, %v457
        %v459 = vpop.f32.mrf.mxu0
        %v460 = vadd.f32 0.0, %v459
        %461 = vmatprep.mubr.f32.mxu0 0.0
        %462 = vmatmul.mubr.f32.gmra.mxu0 %v282
        %v463 = vpop.f32.mrf.mxu0
        %v464 = vadd.f32 0.0, %v463
        %v465 = vpop.f32.mrf.mxu0
        %v466 = vadd.f32 0.0, %v465
        %467 = vmatprep.mubr.f32.mxu0 0.0
        %468 = vmatmul.mubr.f32.gmra.mxu0 %v283
        %v469 = vpop.f32.mrf.mxu0
        %v470 = vadd.f32 0.0, %v469
        %v471 = vpop.f32.mrf.mxu0
        %v472 = vadd.f32 0.0, %v471
        %473 = vmatprep.mubr.f32.mxu0 0.0
        %474 = vmatmul.mubr.f32.gmra.mxu0 %v284
        %v475 = vpop.f32.mrf.mxu0
        %v476 = vadd.f32 0.0, %v475
        %v477 = vpop.f32.mrf.mxu0
        %v478 = vadd.f32 0.0, %v477
        %479 = vmatprep.mubr.f32.mxu0 0.0
        %480 = vmatmul.mubr.f32.gmra.mxu0 %v285
        %v481 = vpop.f32.mrf.mxu0
        %v482 = vadd.f32 0.0, %v481
        %v483 = vpop.f32.mrf.mxu0
        %v484 = vadd.f32 0.0, %v483
        %485 = vmatprep.mubr.f32.mxu0 0.0
        %486 = vmatmul.mubr.f32.gmra.mxu0 %v286
        %v487 = vpop.f32.mrf.mxu0
        %v488 = vadd.f32 0.0, %v487
        %v489 = vpop.f32.mrf.mxu0
        %v490 = vadd.f32 0.0, %v489
        %491 = vmatprep.mubr.f32.mxu0 0.0
        %492 = vmatmul.mubr.f32.gmra.mxu0 %v287
        %v493 = vpop.f32.mrf.mxu0
        %v494 = vadd.f32 0.0, %v493
        %v495 = vpop.f32.mrf.mxu0
        %v496 = vadd.f32 0.0, %v495
        %497 = vmatprep.mubr.f32.mxu0 0.0
        %498 = vmatmul.mubr.f32.gmra.mxu0 %v288
        %v499 = vpop.f32.mrf.mxu0
        %v500 = vadd.f32 0.0, %v499
        %v501 = vpop.f32.mrf.mxu0
        %v502 = vadd.f32 0.0, %v501
        %503 = vmatprep.mubr.f32.mxu0 0.0
        %504 = vmatmul.mubr.f32.gmra.mxu0 %v289
        %v505 = vpop.f32.mrf.mxu0
        %v506 = vadd.f32 0.0, %v505
        %v507 = vpop.f32.mrf.mxu0
        %v508 = vadd.f32 0.0, %v507
        %509 = vmatprep.mubr.f32.mxu0 0.0
        %510 = vmatmul.mubr.f32.gmra.mxu0 %v290
        %v511 = vpop.f32.mrf.mxu0
        %v512 = vadd.f32 0.0, %v511
        %v513 = vpop.f32.mrf.mxu0
        %v514 = vadd.f32 0.0, %v513
        %515 = vmatprep.mubr.f32.mxu0 0.0
        %516 = vmatmul.mubr.f32.gmra.mxu0 %v291
        %v517 = vpop.f32.mrf.mxu0
        %v518 = vadd.f32 0.0, %v517
        %v519 = vpop.f32.mrf.mxu0
        %v520 = vadd.f32 0.0, %v519
        %521 = vmatprep.mubr.f32.mxu0 0.0
        %522 = vmatmul.mubr.f32.gmra.mxu0 %v292
        %v523 = vpop.f32.mrf.mxu0
        %v524 = vadd.f32 0.0, %v523
        %v525 = vpop.f32.mrf.mxu0
        %v526 = vadd.f32 0.0, %v525
        %527 = vmatprep.mubr.f32.mxu0 0.0
        %528 = vmatmul.mubr.f32.gmra.mxu0 %v293
        %v529 = vpop.f32.mrf.mxu0
        %v530 = vadd.f32 0.0, %v529
        %v531 = vpop.f32.mrf.mxu0
        %v532 = vadd.f32 0.0, %v531
        %533 = vmatprep.mubr.f32.mxu0 0.0
        %534 = vmatmul.mubr.f32.gmra.mxu0 %v294
        %v535 = vpop.f32.mrf.mxu0
        %v536 = vadd.f32 0.0, %v535
        %v537 = vpop.f32.mrf.mxu0
        %v538 = vadd.f32 0.0, %v537
        %539 = vmatprep.mubr.f32.mxu0 0.0
        %540 = vmatmul.mubr.f32.gmra.mxu0 %v295
        %v541 = vpop.f32.mrf.mxu0
        %v542 = vadd.f32 0.0, %v541
        %v543 = vpop.f32.mrf.mxu0
        %v544 = vadd.f32 0.0, %v543
        %545 = vmatprep.mubr.f32.mxu0 0.0
        %546 = vmatmul.mubr.f32.gmra.mxu0 %v296
        %v547 = vpop.f32.mrf.mxu0
        %v548 = vadd.f32 0.0, %v547
        %v549 = vpop.f32.mrf.mxu0
        %v550 = vadd.f32 0.0, %v549
        %551 = vmatprep.mubr.f32.mxu0 0.0
        %552 = vmatmul.mubr.f32.gmra.mxu0 %v297
        %v553 = vpop.f32.mrf.mxu0
        %v554 = vadd.f32 0.0, %v553
        %v555 = vpop.f32.mrf.mxu0
        %v556 = vadd.f32 0.0, %v555
        %557 = vmatprep.mubr.f32.mxu0 0.0
        %558 = vmatmul.mubr.f32.gmra.mxu0 %v298
        %v559 = vpop.f32.mrf.mxu0
        %v560 = vadd.f32 0.0, %v559
        %v561 = vpop.f32.mrf.mxu0
        %v562 = vadd.f32 0.0, %v561
        %563 = vmatprep.mubr.f32.mxu0 0.0
        %564 = vmatmul.mubr.f32.gmra.mxu0 %v299
        %v565 = vpop.f32.mrf.mxu0
        %v566 = vadd.f32 0.0, %v565
        %v567 = vpop.f32.mrf.mxu0
        %v568 = vadd.f32 0.0, %v567
        %569 = vmatprep.mubr.f32.mxu0 0.0
        %570 = vmatmul.mubr.f32.gmra.mxu0 %v300
        %v571 = vpop.f32.mrf.mxu0
        %v572 = vadd.f32 0.0, %v571
        %v573 = vpop.f32.mrf.mxu0
        %v574 = vadd.f32 0.0, %v573
        %575 = vmatprep.mubr.f32.mxu0 0.0
        %576 = vmatmul.mubr.f32.gmra.mxu0 %v301
        %v577 = vpop.f32.mrf.mxu0
        %v578 = vadd.f32 0.0, %v577
        %v579 = vpop.f32.mrf.mxu0
        %v580 = vadd.f32 0.0, %v579
        %581 = vmatprep.mubr.f32.mxu0 0.0
        %582 = vmatmul.mubr.f32.gmra.mxu0 %v302
        %v583 = vpop.f32.mrf.mxu0
        %v584 = vadd.f32 0.0, %v583
        %v585 = vpop.f32.mrf.mxu0
        %v586 = vadd.f32 0.0, %v585
        %587 = vmatprep.mubr.f32.mxu0 0.0
        %588 = vmatmul.mubr.f32.gmra.mxu0 %v303
        %v589 = vpop.f32.mrf.mxu0
        %v590 = vadd.f32 0.0, %v589
        %v591 = vpop.f32.mrf.mxu0
        %v592 = vadd.f32 0.0, %v591
        %593 = vmatprep.mubr.f32.mxu0 0.0
        %594 = vmatmul.mubr.f32.gmra.mxu0 %v304
        %v595 = vpop.f32.mrf.mxu0
        %v596 = vadd.f32 0.0, %v595
        %v597 = vpop.f32.mrf.mxu0
        %v598 = vadd.f32 0.0, %v597
        %599 = vmatprep.mubr.f32.mxu0 0.0
        %600 = vmatmul.mubr.f32.gmra.mxu0 %v305
        %v601 = vpop.f32.mrf.mxu0
        %v602 = vadd.f32 0.0, %v601
        %v603 = vpop.f32.mrf.mxu0
        %v604 = vadd.f32 0.0, %v603
        %605 = vmatprep.mubr.f32.mxu0 0.0
        %606 = vmatmul.mubr.f32.gmra.mxu0 %v306
        %v607 = vpop.f32.mrf.mxu0
        %v608 = vadd.f32 0.0, %v607
        %v609 = vpop.f32.mrf.mxu0
        %v610 = vadd.f32 0.0, %v609
        %611 = vdwg.mxu0
        %612 = vmatprep.subr.mxu0 0.0
        %613 = vmatpush1.msra.mxu0 %v354
        %614 = vmatprep.subr.mxu0 0.0
        %615 = vmatpush1.msra.mxu0 %v351
        %616 = vmatprep.subr.mxu0 0.0
        %617 = vmatpush1.msra.mxu0 %v348
        %618 = vmatprep.subr.mxu0 0.0
        %619 = vmatpush1.msra.mxu0 %v345
        %620 = vmatprep.subr.mxu0 0.0
        %621 = vmatpush1.msra.mxu0 %v342
        %622 = vmatprep.subr.mxu0 0.0
        %623 = vmatpush1.msra.mxu0 %v339
        %624 = vmatprep.subr.mxu0 0.0
        %625 = vmatpush1.msra.mxu0 %v336
        %626 = vmatprep.subr.mxu0 0.0
        %627 = vmatpush1.msra.mxu0 %v333
        %628 = vmatprep.subr.mxu0 0.0
        %629 = vmatpush1.msra.mxu0 %v330
        %630 = vmatprep.subr.mxu0 0.0
        %631 = vmatpush1.msra.mxu0 %v327
        %632 = vmatprep.subr.mxu0 0.0
        %633 = vmatpush1.msra.mxu0 %v324
        %634 = vmatprep.subr.mxu0 0.0
        %635 = vmatpush1.msra.mxu0 %v321
        %636 = vmatprep.subr.mxu0 0.0
        %637 = vmatpush1.msra.mxu0 %v318
        %638 = vmatprep.subr.mxu0 0.0
        %639 = vmatpush1.msra.mxu0 %v315
        %640 = vmatprep.subr.mxu0 0.0
        %641 = vmatpush1.msra.mxu0 %v312
        %642 = vmatprep.subr.mxu0 0.0
        %643 = vmatpush1.msra.mxu0 %v309
        %644 = vmatprep.subr.mxu0 0.0
        %645 = vmatpush2.msra.mxu0 0.0
        %646 = vmatprep.subr.mxu0 0.0
        %647 = vmatpush2.msra.mxu0 0.0
        %648 = vmatprep.subr.mxu0 0.0
        %649 = vmatpush2.msra.mxu0 0.0
        %650 = vmatprep.subr.mxu0 0.0
        %651 = vmatpush2.msra.mxu0 0.0
        %652 = vmatprep.subr.mxu0 0.0
        %653 = vmatpush2.msra.mxu0 0.0
        %654 = vmatprep.subr.mxu0 0.0
        %655 = vmatpush2.msra.mxu0 0.0
        %656 = vmatprep.subr.mxu0 0.0
        %657 = vmatpush2.msra.mxu0 0.0
        %658 = vmatprep.subr.mxu0 0.0
        %659 = vmatpush2.msra.mxu0 0.0
        %660 = vmatprep.subr.mxu0 0.0
        %661 = vmatpush2.msra.mxu0 0.0
        %662 = vmatprep.subr.mxu0 0.0
        %663 = vmatpush2.msra.mxu0 0.0
        %664 = vmatprep.subr.mxu0 0.0
        %665 = vmatpush2.msra.mxu0 0.0
        %666 = vmatprep.subr.mxu0 0.0
        %667 = vmatpush2.msra.mxu0 0.0
        %668 = vmatprep.subr.mxu0 0.0
        %669 = vmatpush2.msra.mxu0 0.0
        %670 = vmatprep.subr.mxu0 0.0
        %671 = vmatpush2.msra.mxu0 0.0
        %672 = vmatprep.subr.mxu0 0.0
        %673 = vmatpush2.msra.mxu0 0.0
        %674 = vmatprep.subr.mxu0 0.0
        %675 = vmatpush2.msra.mxu0 0.0
        %676 = vmatprep.mubr.f32.mxu0 0.0
        %677 = vmatmul.mubr.f32.gmra.mxu0 %v275
        %v678 = vpop.f32.mrf.mxu0
        %v679 = vadd.f32 0.0, %v678
        %v680 = vpop.f32.mrf.mxu0
        %681 = vmatprep.mubr.f32.mxu0 0.0
        %682 = vmatmul.mubr.f32.gmra.mxu0 %v276
        %v683 = vpop.f32.mrf.mxu0
        %v684 = vadd.f32 0.0, %v683
        %v685 = vpop.f32.mrf.mxu0
        %686 = vmatprep.mubr.f32.mxu0 0.0
        %687 = vmatmul.mubr.f32.gmra.mxu0 %v277
        %v688 = vpop.f32.mrf.mxu0
        %v689 = vadd.f32 0.0, %v688
        %v690 = vpop.f32.mrf.mxu0
        %691 = vmatprep.mubr.f32.mxu0 0.0
        %692 = vmatmul.mubr.f32.gmra.mxu0 %v278
        %v693 = vpop.f32.mrf.mxu0
        %v694 = vadd.f32 0.0, %v693
        %v695 = vpop.f32.mrf.mxu0
        %696 = vmatprep.mubr.f32.mxu0 0.0
        %697 = vmatmul.mubr.f32.gmra.mxu0 %v279
        %v698 = vpop.f32.mrf.mxu0
        %v699 = vadd.f32 0.0, %v698
        %v700 = vpop.f32.mrf.mxu0
        %701 = vmatprep.mubr.f32.mxu0 0.0
        %702 = vmatmul.mubr.f32.gmra.mxu0 %v280
        %v703 = vpop.f32.mrf.mxu0
        %v704 = vadd.f32 0.0, %v703
        %v705 = vpop.f32.mrf.mxu0
        %706 = vmatprep.mubr.f32.mxu0 0.0
        %707 = vmatmul.mubr.f32.gmra.mxu0 %v281
        %v708 = vpop.f32.mrf.mxu0
        %v709 = vadd.f32 0.0, %v708
        %v710 = vpop.f32.mrf.mxu0
        %711 = vmatprep.mubr.f32.mxu0 0.0
        %712 = vmatmul.mubr.f32.gmra.mxu0 %v282
        %v713 = vpop.f32.mrf.mxu0
        %v714 = vadd.f32 0.0, %v713
        %v715 = vpop.f32.mrf.mxu0
        %716 = vmatprep.mubr.f32.mxu0 0.0
        %717 = vmatmul.mubr.f32.gmra.mxu0 %v283
        %v718 = vpop.f32.mrf.mxu0
        %v719 = vadd.f32 0.0, %v718
        %v720 = vpop.f32.mrf.mxu0
        %721 = vmatprep.mubr.f32.mxu0 0.0
        %722 = vmatmul.mubr.f32.gmra.mxu0 %v284
        %v723 = vpop.f32.mrf.mxu0
        %v724 = vadd.f32 0.0, %v723
        %v725 = vpop.f32.mrf.mxu0
        %726 = vmatprep.mubr.f32.mxu0 0.0
        %727 = vmatmul.mubr.f32.gmra.mxu0 %v285
        %v728 = vpop.f32.mrf.mxu0
        %v729 = vadd.f32 0.0, %v728
        %v730 = vpop.f32.mrf.mxu0
        %731 = vmatprep.mubr.f32.mxu0 0.0
        %732 = vmatmul.mubr.f32.gmra.mxu0 %v286
        %v733 = vpop.f32.mrf.mxu0
        %v734 = vadd.f32 0.0, %v733
        %v735 = vpop.f32.mrf.mxu0
        %736 = vmatprep.mubr.f32.mxu0 0.0
        %737 = vmatmul.mubr.f32.gmra.mxu0 %v287
        %v738 = vpop.f32.mrf.mxu0
        %v739 = vadd.f32 0.0, %v738
        %v740 = vpop.f32.mrf.mxu0
        %741 = vmatprep.mubr.f32.mxu0 0.0
        %742 = vmatmul.mubr.f32.gmra.mxu0 %v288
        %v743 = vpop.f32.mrf.mxu0
        %v744 = vadd.f32 0.0, %v743
        %v745 = vpop.f32.mrf.mxu0
        %746 = vmatprep.mubr.f32.mxu0 0.0
        %747 = vmatmul.mubr.f32.gmra.mxu0 %v289
        %v748 = vpop.f32.mrf.mxu0
        %v749 = vadd.f32 0.0, %v748
        %v750 = vpop.f32.mrf.mxu0
        %751 = vmatprep.mubr.f32.mxu0 0.0
        %752 = vmatmul.mubr.f32.gmra.mxu0 %v290
        %v753 = vpop.f32.mrf.mxu0
        %v754 = vadd.f32 0.0, %v753
        %v755 = vpop.f32.mrf.mxu0
        %756 = vmatprep.mubr.f32.mxu0 0.0
        %757 = vmatmul.mubr.f32.gmra.mxu0 %v291
        %v758 = vpop.f32.mrf.mxu0
        %v759 = vadd.f32 0.0, %v758
        %v760 = vpop.f32.mrf.mxu0
        %761 = vmatprep.mubr.f32.mxu0 0.0
        %762 = vmatmul.mubr.f32.gmra.mxu0 %v292
        %v763 = vpop.f32.mrf.mxu0
        %v764 = vadd.f32 0.0, %v763
        %v765 = vpop.f32.mrf.mxu0
        %766 = vmatprep.mubr.f32.mxu0 0.0
        %767 = vmatmul.mubr.f32.gmra.mxu0 %v293
        %v768 = vpop.f32.mrf.mxu0
        %v769 = vadd.f32 0.0, %v768
        %v770 = vpop.f32.mrf.mxu0
        %771 = vmatprep.mubr.f32.mxu0 0.0
        %772 = vmatmul.mubr.f32.gmra.mxu0 %v294
        %v773 = vpop.f32.mrf.mxu0
        %v774 = vadd.f32 0.0, %v773
        %v775 = vpop.f32.mrf.mxu0
        %776 = vmatprep.mubr.f32.mxu0 0.0
        %777 = vmatmul.mubr.f32.gmra.mxu0 %v295
        %v778 = vpop.f32.mrf.mxu0
        %v779 = vadd.f32 0.0, %v778
        %v780 = vpop.f32.mrf.mxu0
        %781 = vmatprep.mubr.f32.mxu0 0.0
        %782 = vmatmul.mubr.f32.gmra.mxu0 %v296
        %v783 = vpop.f32.mrf.mxu0
        %v784 = vadd.f32 0.0, %v783
        %v785 = vpop.f32.mrf.mxu0
        %786 = vmatprep.mubr.f32.mxu0 0.0
        %787 = vmatmul.mubr.f32.gmra.mxu0 %v297
        %v788 = vpop.f32.mrf.mxu0
        %v789 = vadd.f32 0.0, %v788
        %v790 = vpop.f32.mrf.mxu0
        %791 = vmatprep.mubr.f32.mxu0 0.0
        %792 = vmatmul.mubr.f32.gmra.mxu0 %v298
        %v793 = vpop.f32.mrf.mxu0
        %v794 = vadd.f32 0.0, %v793
        %v795 = vpop.f32.mrf.mxu0
        %796 = vmatprep.mubr.f32.mxu0 0.0
        %797 = vmatmul.mubr.f32.gmra.mxu0 %v299
        %v798 = vpop.f32.mrf.mxu0
        %v799 = vadd.f32 0.0, %v798
        %v800 = vpop.f32.mrf.mxu0
        %801 = vmatprep.mubr.f32.mxu0 0.0
        %802 = vmatmul.mubr.f32.gmra.mxu0 %v300
        %v803 = vpop.f32.mrf.mxu0
        %v804 = vadd.f32 0.0, %v803
        %v805 = vpop.f32.mrf.mxu0
        %806 = vmatprep.mubr.f32.mxu0 0.0
        %807 = vmatmul.mubr.f32.gmra.mxu0 %v301
        %v808 = vpop.f32.mrf.mxu0
        %v809 = vadd.f32 0.0, %v808
        %v810 = vpop.f32.mrf.mxu0
        %811 = vmatprep.mubr.f32.mxu0 0.0
        %812 = vmatmul.mubr.f32.gmra.mxu0 %v302
        %v813 = vpop.f32.mrf.mxu0
        %v814 = vadd.f32 0.0, %v813
        %v815 = vpop.f32.mrf.mxu0
        %816 = vmatprep.mubr.f32.mxu0 0.0
        %817 = vmatmul.mubr.f32.gmra.mxu0 %v303
        %v818 = vpop.f32.mrf.mxu0
        %v819 = vadd.f32 0.0, %v818
        %v820 = vpop.f32.mrf.mxu0
        %821 = vmatprep.mubr.f32.mxu0 0.0
        %822 = vmatmul.mubr.f32.gmra.mxu0 %v304
        %v823 = vpop.f32.mrf.mxu0
        %v824 = vadd.f32 0.0, %v823
        %v825 = vpop.f32.mrf.mxu0
        %826 = vmatprep.mubr.f32.mxu0 0.0
        %827 = vmatmul.mubr.f32.gmra.mxu0 %v305
        %v828 = vpop.f32.mrf.mxu0
        %v829 = vadd.f32 0.0, %v828
        %v830 = vpop.f32.mrf.mxu0
        %831 = vmatprep.mubr.f32.mxu0 0.0
        %832 = vmatmul.mubr.f32.gmra.mxu0 %v306
        %v833 = vpop.f32.mrf.mxu0
        %v834 = vadd.f32 0.0, %v833
        %v835 = vpop.f32.mrf.mxu0
        %836 = vdwg.mxu0
        %v837 = vmul.f32 %v422, 0.17677669
        %v838 = vmul.f32 %v428, 0.17677669
        %v839 = vmul.f32 %v434, 0.17677669
        %v840 = vmul.f32 %v440, 0.17677669
        %v841 = vmul.f32 %v446, 0.17677669
        %v842 = vmul.f32 %v452, 0.17677669
        %v843 = vmul.f32 %v458, 0.17677669
        %v844 = vmul.f32 %v464, 0.17677669
        %v845 = vmul.f32 %v470, 0.17677669
        %v846 = vmul.f32 %v476, 0.17677669
        %v847 = vmul.f32 %v482, 0.17677669
        %v848 = vmul.f32 %v488, 0.17677669
        %v849 = vmul.f32 %v494, 0.17677669
        %v850 = vmul.f32 %v500, 0.17677669
        %v851 = vmul.f32 %v506, 0.17677669
        %v852 = vmul.f32 %v512, 0.17677669
        %v853 = vmul.f32 %v518, 0.17677669
        %v854 = vmul.f32 %v524, 0.17677669
        %v855 = vmul.f32 %v530, 0.17677669
        %v856 = vmul.f32 %v536, 0.17677669
        %v857 = vmul.f32 %v542, 0.17677669
        %v858 = vmul.f32 %v548, 0.17677669
        %v859 = vmul.f32 %v554, 0.17677669
        %v860 = vmul.f32 %v560, 0.17677669
        %v861 = vmul.f32 %v566, 0.17677669
        %v862 = vmul.f32 %v572, 0.17677669
        %v863 = vmul.f32 %v578, 0.17677669
        %v864 = vmul.f32 %v584, 0.17677669
        %v865 = vmul.f32 %v590, 0.17677669
        %v866 = vmul.f32 %v596, 0.17677669
        %v867 = vmul.f32 %v602, 0.17677669
        %v868 = vmul.f32 %v608, 0.17677669
        %869 = vst [vmem:[%s256] sm:$0xff] %v837
        %870 = vst [vmem:[%s256 + $0x8] sm:$0xff] %v838
        %871 = vst [vmem:[%s256 + $0x10] sm:$0xff] %v839
        %872 = vst [vmem:[%s256 + $0x18] sm:$0xff] %v840
        %873 = vst [vmem:[%s256 + $0x20] sm:$0xff] %v841
        %874 = vst [vmem:[%s256 + $0x28] sm:$0xff] %v842
        %875 = vst [vmem:[%s256 + $0x30] sm:$0xff] %v843
        %876 = vst [vmem:[%s256 + $0x38] sm:$0xff] %v844
        %877 = vst [vmem:[%s256 + $0x40] sm:$0xff] %v845
        %878 = vst [vmem:[%s256 + $0x48] sm:$0xff] %v846
        %879 = vst [vmem:[%s256 + $0x50] sm:$0xff] %v847
        %880 = vst [vmem:[%s256 + $0x58] sm:$0xff] %v848
        %881 = vst [vmem:[%s256 + $0x60] sm:$0xff] %v849
        %882 = vst [vmem:[%s256 + $0x68] sm:$0xff] %v850
        %883 = vst [vmem:[%s256 + $0x70] sm:$0xff] %v851
        %884 = vst [vmem:[%s256 + $0x78] sm:$0xff] %v852
        %885 = vst [vmem:[%s256 + $0x80] sm:$0xff] %v853
        %886 = vst [vmem:[%s256 + $0x88] sm:$0xff] %v854
        %887 = vst [vmem:[%s256 + $0x90] sm:$0xff] %v855
        %888 = vst [vmem:[%s256 + $0x98] sm:$0xff] %v856
        %889 = vst [vmem:[%s256 + $0xa0] sm:$0xff] %v857
        %890 = vst [vmem:[%s256 + $0xa8] sm:$0xff] %v858
        %891 = vst [vmem:[%s256 + $0xb0] sm:$0xff] %v859
        %892 = vst [vmem:[%s256 + $0xb8] sm:$0xff] %v860
        %893 = vst [vmem:[%s256 + $0xc0] sm:$0xff] %v861
        %894 = vst [vmem:[%s256 + $0xc8] sm:$0xff] %v862
        %895 = vst [vmem:[%s256 + $0xd0] sm:$0xff] %v863
        %896 = vst [vmem:[%s256 + $0xd8] sm:$0xff] %v864
        %897 = vst [vmem:[%s256 + $0xe0] sm:$0xff] %v865
        %898 = vst [vmem:[%s256 + $0xe8] sm:$0xff] %v866
        %899 = vst [vmem:[%s256 + $0xf0] sm:$0xff] %v867
        %900 = vst [vmem:[%s256 + $0xf8] sm:$0xff] %v868
        %901 = vxpose.xlu0.b32.start [1/16] %v424, 128
        %902 = vxpose.xlu0.b32.cont [2/16] %v430, 128
        %903 = vxpose.xlu0.b32.cont [3/16] %v436, 128
        %904 = vxpose.xlu0.b32.cont [4/16] %v442, 128
        %905 = vxpose.xlu0.b32.cont [5/16] %v448, 128
        %906 = vxpose.xlu0.b32.cont [6/16] %v454, 128
        %907 = vxpose.xlu0.b32.cont [7/16] %v460, 128
        %908 = vxpose.xlu0.b32.cont [8/16] %v466, 128
        %909 = vxpose.xlu0.b32.cont [9/16] %v472, 128
        %910 = vxpose.xlu0.b32.cont [10/16] %v478, 128
        %911 = vxpose.xlu0.b32.cont [11/16] %v484, 128
        %912 = vxpose.xlu0.b32.cont [12/16] %v490, 128
        %913 = vxpose.xlu0.b32.cont [13/16] %v496, 128
        %914 = vxpose.xlu0.b32.cont [14/16] %v502, 128
        %915 = vxpose.xlu0.b32.cont [15/16] %v508, 128
        %916 = vxpose.xlu0.b32.end [16/16] %v514, 128
        %v917 = vpop.trf.xlu0
        %v918 = vpop.trf.xlu0
        %v919 = vpop.trf.xlu0
        %v920 = vpop.trf.xlu0
        %v921 = vpop.trf.xlu0
        %v922 = vpop.trf.xlu0
        %v923 = vpop.trf.xlu0
        %v924 = vpop.trf.xlu0
        %v925 = vpop.trf.xlu0
        %v926 = vpop.trf.xlu0
        %v927 = vpop.trf.xlu0
        %v928 = vpop.trf.xlu0
        %v929 = vpop.trf.xlu0
        %v930 = vpop.trf.xlu0
        %v931 = vpop.trf.xlu0
        %v932 = vpop.trf.xlu0
        %933 = vxpose.xlu0.b32.start [1/16] %v520, 128
        %934 = vxpose.xlu0.b32.cont [2/16] %v526, 128
        %935 = vxpose.xlu0.b32.cont [3/16] %v532, 128
        %936 = vxpose.xlu0.b32.cont [4/16] %v538, 128
        %937 = vxpose.xlu0.b32.cont [5/16] %v544, 128
        %938 = vxpose.xlu0.b32.cont [6/16] %v550, 128
        %939 = vxpose.xlu0.b32.cont [7/16] %v556, 128
        %940 = vxpose.xlu0.b32.cont [8/16] %v562, 128
        %941 = vxpose.xlu0.b32.cont [9/16] %v568, 128
        %942 = vxpose.xlu0.b32.cont [10/16] %v574, 128
        %943 = vxpose.xlu0.b32.cont [11/16] %v580, 128
        %944 = vxpose.xlu0.b32.cont [12/16] %v586, 128
        %945 = vxpose.xlu0.b32.cont [13/16] %v592, 128
        %946 = vxpose.xlu0.b32.cont [14/16] %v598, 128
        %947 = vxpose.xlu0.b32.cont [15/16] %v604, 128
        %948 = vxpose.xlu0.b32.end [16/16] %v610, 128
        %v949 = vpop.trf.xlu0
        %v950 = vpop.trf.xlu0
        %v951 = vpop.trf.xlu0
        %v952 = vpop.trf.xlu0
        %v953 = vpop.trf.xlu0
        %v954 = vpop.trf.xlu0
        %v955 = vpop.trf.xlu0
        %v956 = vpop.trf.xlu0
        %v957 = vpop.trf.xlu0
        %v958 = vpop.trf.xlu0
        %v959 = vpop.trf.xlu0
        %v960 = vpop.trf.xlu0
        %v961 = vpop.trf.xlu0
        %v962 = vpop.trf.xlu0
        %v963 = vpop.trf.xlu0
        %v964 = vpop.trf.xlu0
        %965 = vst [vmem:[%s263] sm:$0xff] %v917
        %966 = vst [vmem:[%s263 + $0x8] sm:$0xff] %v949
        %967 = vst [vmem:[%s263 + $0x10] sm:$0xff] %v918
        %968 = vst [vmem:[%s263 + $0x18] sm:$0xff] %v950
        %969 = vst [vmem:[%s263 + $0x20] sm:$0xff] %v919
        %970 = vst [vmem:[%s263 + $0x28] sm:$0xff] %v951
        %971 = vst [vmem:[%s263 + $0x30] sm:$0xff] %v920
        %972 = vst [vmem:[%s263 + $0x38] sm:$0xff] %v952
        %973 = vst [vmem:[%s263 + $0x40] sm:$0xff] %v921
        %974 = vst [vmem:[%s263 + $0x48] sm:$0xff] %v953
        %975 = vst [vmem:[%s263 + $0x50] sm:$0xff] %v922
        %976 = vst [vmem:[%s263 + $0x58] sm:$0xff] %v954
        %977 = vst [vmem:[%s263 + $0x60] sm:$0xff] %v923
        %978 = vst [vmem:[%s263 + $0x68] sm:$0xff] %v955
        %979 = vst [vmem:[%s263 + $0x70] sm:$0xff] %v924
        %980 = vst [vmem:[%s263 + $0x78] sm:$0xff] %v956
        %981 = vst [vmem:[%s263 + $0x80] sm:$0xff] %v925
        %982 = vst [vmem:[%s263 + $0x88] sm:$0xff] %v957
        %983 = vst [vmem:[%s263 + $0x90] sm:$0xff] %v926
        %984 = vst [vmem:[%s263 + $0x98] sm:$0xff] %v958
        %985 = vst [vmem:[%s263 + $0xa0] sm:$0xff] %v927
        %986 = vst [vmem:[%s263 + $0xa8] sm:$0xff] %v959
        %987 = vst [vmem:[%s263 + $0xb0] sm:$0xff] %v928
        %988 = vst [vmem:[%s263 + $0xb8] sm:$0xff] %v960
        %989 = vst [vmem:[%s263 + $0xc0] sm:$0xff] %v929
        %990 = vst [vmem:[%s263 + $0xc8] sm:$0xff] %v961
        %991 = vst [vmem:[%s263 + $0xd0] sm:$0xff] %v930
        %992 = vst [vmem:[%s263 + $0xd8] sm:$0xff] %v962
        %993 = vst [vmem:[%s263 + $0xe0] sm:$0xff] %v931
        %994 = vst [vmem:[%s263 + $0xe8] sm:$0xff] %v963
        %995 = vst [vmem:[%s263 + $0xf0] sm:$0xff] %v932
        %996 = vst [vmem:[%s263 + $0xf8] sm:$0xff] %v964
        %997 = vst [vmem:[%s270] sm:$0xff] %v679
        %998 = vst [vmem:[%s270 + $0x8] sm:$0xff] %v684
        %999 = vst [vmem:[%s270 + $0x10] sm:$0xff] %v689
        %1000 = vst [vmem:[%s270 + $0x18] sm:$0xff] %v694
        %1001 = vst [vmem:[%s270 + $0x20] sm:$0xff] %v699
        %1002 = vst [vmem:[%s270 + $0x28] sm:$0xff] %v704
        %1003 = vst [vmem:[%s270 + $0x30] sm:$0xff] %v709
        %1004 = vst [vmem:[%s270 + $0x38] sm:$0xff] %v714
        %1005 = vst [vmem:[%s270 + $0x40] sm:$0xff] %v719
        %1006 = vst [vmem:[%s270 + $0x48] sm:$0xff] %v724
        %1007 = vst [vmem:[%s270 + $0x50] sm:$0xff] %v729
        %1008 = vst [vmem:[%s270 + $0x58] sm:$0xff] %v734
        %1009 = vst [vmem:[%s270 + $0x60] sm:$0xff] %v739
        %1010 = vst [vmem:[%s270 + $0x68] sm:$0xff] %v744
        %1011 = vst [vmem:[%s270 + $0x70] sm:$0xff] %v749
        %1012 = vst [vmem:[%s270 + $0x78] sm:$0xff] %v754
        %1013 = vst [vmem:[%s270 + $0x80] sm:$0xff] %v759
        %1014 = vst [vmem:[%s270 + $0x88] sm:$0xff] %v764
        %1015 = vst [vmem:[%s270 + $0x90] sm:$0xff] %v769
        %1016 = vst [vmem:[%s270 + $0x98] sm:$0xff] %v774
        %1017 = vst [vmem:[%s270 + $0xa0] sm:$0xff] %v779
        %1018 = vst [vmem:[%s270 + $0xa8] sm:$0xff] %v784
        %1019 = vst [vmem:[%s270 + $0xb0] sm:$0xff] %v789
        %1020 = vst [vmem:[%s270 + $0xb8] sm:$0xff] %v794
        %1021 = vst [vmem:[%s270 + $0xc0] sm:$0xff] %v799
        %1022 = vst [vmem:[%s270 + $0xc8] sm:$0xff] %v804
        %1023 = vst [vmem:[%s270 + $0xd0] sm:$0xff] %v809
        %1024 = vst [vmem:[%s270 + $0xd8] sm:$0xff] %v814
        %1025 = vst [vmem:[%s270 + $0xe0] sm:$0xff] %v819
        %1026 = vst [vmem:[%s270 + $0xe8] sm:$0xff] %v824
        %1027 = vst [vmem:[%s270 + $0xf0] sm:$0xff] %v829
        %1028 = vst [vmem:[%s270 + $0xf8] sm:$0xff] %v834
        %s1029 = sand.u32 %s97, 1
        %s1030 = scalar_lea.sflag [#allocation4], %s1029
        %s1031 = sand.u32 %s97, 1
        %s1032 = smul.addr %s1031, 256
        %s1033 = scalar_lea.vmem [#allocation7], %s1032
        %s1034 = sand.u32 %s26, 1
        %s1035 = scalar_lea.sflag [#allocation9], %s1034
        %s1036 = sand.u32 %s125, 1
        %s1037 = smul.addr %s1036, 256
        %s1038 = scalar_lea.vmem [#allocation8], %s1037
        %s1039 = sand.u32 %s26, 1
        %s1040 = scalar_lea.sflag [#allocation9], %s1039
        %s1041 = sand.u32 %s153, 1
        %s1042 = smul.addr %s1041, 256
        %s1043 = scalar_lea.vmem [#allocation10], %s1042
        // Predicated region
        $region37: #{tpu_custom_call.1} parent=27 // pred_check
          %p1044 = pneg %p107
        $region38: #{tpu_custom_call.1} parent=27 // pred_check_branch
          %1046 = sbr.rel (%p1044) target = $region40
        $region39: #{tpu_custom_call.1} parent=27 // pred_region
          %s1047 = smul.u32 32, %s31
          %s1049 = ssub.s32 4096, 4096
          %1050 = vsyncadd %s1030, %s1049
          %s1051 = smul.addr %s30, 32
          %s1052 = sadd.s32 %s1047, %s1051
          %s1053 = smul.addr %s1052, 128
          %s1054 = scalar_lea.hbm %s2, %s1053
          %s1055 = sshll.u32 %s1033, 4
          %s1056 = int_to_ptr.vmem [resolvable:$true] %s1055
          %1061 = dma.vmem_to_hbm [thread:$0]  %s1056, 4096, %s1054, %s1030, 128, 128, 8
        $region40: #{tpu_custom_call.1} parent=27 // pred_fallthru
          _
        // Predicated region
        $region41: #{tpu_custom_call.1} parent=27 // pred_check
          %p1062 = pneg %p135
        $region42: #{tpu_custom_call.1} parent=27 // pred_check_branch
          %1064 = sbr.rel (%p1062) target = $region44
        $region43: #{tpu_custom_call.1} parent=27 // pred_region
          %s1065 = smul.u32 2, %s31
          %s1067 = ssub.s32 4096, 4096
          %1068 = vsyncadd %s1035, %s1067
          %s1069 = smul.addr %s30, 32
          %s1070 = sadd.s32 %s1065, %s1069
          %s1071 = smul.addr %s1070, 128
          %s1072 = scalar_lea.hbm %s3, %s1071
          %s1073 = sshll.u32 %s1038, 4
          %s1074 = int_to_ptr.vmem [resolvable:$true] %s1073
          %1079 = dma.vmem_to_hbm [thread:$0]  %s1074, 4096, %s1072, %s1035, 256, 256, 16
        $region44: #{tpu_custom_call.1} parent=27 // pred_fallthru
          _
        // Predicated region
        $region45: #{tpu_custom_call.1} parent=27 // pred_check
          %p1080 = pneg %p163
        $region46: #{tpu_custom_call.1} parent=27 // pred_check_branch
          %1082 = sbr.rel (%p1080) target = $region48
        $region47: #{tpu_custom_call.1} parent=27 // pred_region
          %s1083 = smul.u32 32, %s31
          %s1085 = ssub.s32 4096, 4096
          %1086 = vsyncadd %s1040, %s1085
          %s1087 = smul.addr %s30, 32
          %s1088 = sadd.s32 %s1083, %s1087
          %s1089 = smul.addr %s1088, 128
          %s1090 = scalar_lea.hbm %s4, %s1089
          %s1091 = sshll.u32 %s1043, 4
          %s1092 = int_to_ptr.vmem [resolvable:$true] %s1091
          %1097 = dma.vmem_to_hbm [thread:$0]  %s1092, 4096, %s1090, %s1040, 128, 128, 8
        $region48: #{tpu_custom_call.1} parent=27 // pred_fallthru
          _
      $region28: #{tpu_custom_call.1} parent=5 // pred_fallthru
        _
      %p1098 = scmp.le.s32.totalorder 2, %s21
      // Predicated region
      $region49: #{tpu_custom_call.1} parent=5 // pred_check
        %p1099 = pneg %p1098
      $region50: #{tpu_custom_call.1} parent=5 // pred_check_branch
        %1101 = sbr.rel (%p1099) target = $region52
      $region51: #{tpu_custom_call.1} parent=5 // pred_region
        %s1102 = ssub.s32 %s21, 2
        // Predicated region
        $region53: #{tpu_custom_call.1} parent=51 // pred_check
          %p1103 = pneg %p113
        $region54: #{tpu_custom_call.1} parent=51 // pred_check_branch
          %1105 = sbr.rel (%p1103) target = $region56
        $region55: #{tpu_custom_call.1} parent=51 // pred_region
          %s1106 = sand.u32 %s98, 1
          %s1107 = scalar_lea.sflag [#allocation4], %s1106
          %s1108 = sand.u32 %s98, 1
          %s1109 = smul.addr %s1108, 256
          %s1110 = scalar_lea.vmem [#allocation7], %s1109
          %1111 = dma.done %s1107, 4096
        $region56: #{tpu_custom_call.1} parent=51 // pred_fallthru
          _
        // Predicated region
        $region57: #{tpu_custom_call.1} parent=51 // pred_check
          %p1112 = pneg %p141
        $region58: #{tpu_custom_call.1} parent=51 // pred_check_branch
          %1114 = sbr.rel (%p1112) target = $region60
        $region59: #{tpu_custom_call.1} parent=51 // pred_region
          %s1115 = sand.u32 %s27, 1
          %s1116 = scalar_lea.sflag [#allocation9], %s1115
          %s1117 = sand.u32 %s126, 1
          %s1118 = smul.addr %s1117, 256
          %s1119 = scalar_lea.vmem [#allocation8], %s1118
          %1120 = dma.done %s1116, 4096
        $region60: #{tpu_custom_call.1} parent=51 // pred_fallthru
          _
        // Predicated region
        $region61: #{tpu_custom_call.1} parent=51 // pred_check
          %p1121 = pneg %p169
        $region62: #{tpu_custom_call.1} parent=51 // pred_check_branch
          %1123 = sbr.rel (%p1121) target = $region64
        $region63: #{tpu_custom_call.1} parent=51 // pred_region
          %s1124 = sand.u32 %s27, 1
          %s1125 = scalar_lea.sflag [#allocation9], %s1124
          %s1126 = sand.u32 %s154, 1
          %s1127 = smul.addr %s1126, 256
          %s1128 = scalar_lea.vmem [#allocation10], %s1127
          %1129 = dma.done %s1125, 4096
        $region64: #{tpu_custom_call.1} parent=51 // pred_fallthru
          _
      $region52: #{tpu_custom_call.1} parent=5 // pred_fallthru
        _
    $region6: #{tpu_custom_call.1} parent=1 // loop_footer
      %s25 = sadd.s32 1, %s21
    $region7: #{tpu_custom_call.1} parent=1 // loop_footer_branch
      %20 = sbr.rel target = $region3
    $region8: #{tpu_custom_call.1} parent=1 // loop_exit
      _
    %1130 = vsyncpa [#allocation3], 1
    %s1131 = scalar_lea.sflag [#allocation3], 1
    %1132 = vsyncpa %s1131, 1
    %1133 = vsyncpa [#allocation6], 1
    %1134 = vsyncpa [#allocation4], 1
    %s1135 = scalar_lea.sflag [#allocation4], 1
    %1136 = vsyncpa %s1135, 1
    %1137 = vsyncpa [#allocation9], 1
    %s1138 = scalar_lea.sflag [#allocation9], 1
    %1139 = vsyncpa %s1138, 1

</llo_original>
